<compile_context>
chip_gen: v5e
topology: v5e:2x2
jax: 0.10.0
libtpu: 0.0.40
codegen_flags: <defaults>
</compile_context>

<pallas_src>
import jax
import jax.numpy as jnp
from jax.experimental import pallas as pl
from jax.experimental.pallas import tpu as pltpu


def _round_up(n, m):
    return ((n + m - 1) // m) * m


# ----------------------------------------------------------------------------
# Kernel 1a: fused  gi = ELU(x @ Wp + bp) @ W_ih^T + b_ih   (tiled over rows)
# ----------------------------------------------------------------------------
def _proj_elu_gi_kernel(x_ref, wp_ref, bp_ref, wih_ref, bih_ref, gi_ref):
    # projection + ELU(alpha=1); bf16 MXU inputs, f32 accumulation
    p = jnp.dot(x_ref[...].astype(jnp.bfloat16), wp_ref[...],
                preferred_element_type=jnp.float32) + bp_ref[...]
    # ELU: where() selects p for p > 0, so no clamp needed on the exp branch
    p = jnp.where(p > 0, p, jnp.exp(p) - 1.0)
    # input->hidden gates for every row (timestep) in this tile
    gi_ref[...] = jnp.dot(p.astype(jnp.bfloat16), wih_ref[...],
                          preferred_element_type=jnp.float32) + bih_ref[...]


# ----------------------------------------------------------------------------
# Kernel 1b: no-projection variant   gi = x @ W_ih^T + b_ih
# ----------------------------------------------------------------------------
def _gi_kernel(x_ref, wih_ref, bih_ref, gi_ref):
    gi_ref[...] = jnp.dot(x_ref[...].astype(jnp.bfloat16), wih_ref[...],
                          preferred_element_type=jnp.float32) + bih_ref[...]


def precompute_input_gates(x, wih_t, bih, proj_w=None, proj_b=None, tile_n=256):
    """x: [N, E] f32, wih_t: [E, 3H] bf16, bih: [1, 3H] f32 -> gi: [N, 3H] f32."""
    N, E = x.shape
    G = wih_t.shape[1]
    tn = min(tile_n, _round_up(N, 8))          # rows per tile (multiple of 8)
    n_pad = _round_up(N, tn)
    if n_pad != N:
        x = jnp.pad(x, ((0, n_pad - N), (0, 0)))

    common = dict(
        out_shape=jax.ShapeDtypeStruct((n_pad, G), jnp.float32),
        compiler_params=pltpu.CompilerParams(
            dimension_semantics=("parallel",),
            vmem_limit_bytes=32 * 1024 * 1024,
        ),
    )

    if proj_w is not None:
        gi = pl.pallas_call(
            _proj_elu_gi_kernel,
            grid_spec=pltpu.PrefetchScalarGridSpec(
                num_scalar_prefetch=0,
                grid=(n_pad // tn,),
                in_specs=[
                    pl.BlockSpec((tn, E), lambda i: (i, 0)),   # activations (tiled, pipelined)
                    pl.BlockSpec((E, E), lambda i: (0, 0)),    # Wp (grid-invariant)
                    pl.BlockSpec((1, E), lambda i: (0, 0)),    # bp
                    pl.BlockSpec((E, G), lambda i: (0, 0)),    # W_ih^T (grid-invariant)
                    pl.BlockSpec((1, G), lambda i: (0, 0)),    # b_ih
                ],
                out_specs=pl.BlockSpec((tn, G), lambda i: (i, 0)),
            ),
            **common,
        )(x,
          proj_w.astype(jnp.bfloat16),
          proj_b.reshape(1, E).astype(jnp.float32),
          wih_t, bih)
    else:
        gi = pl.pallas_call(
            _gi_kernel,
            grid_spec=pltpu.PrefetchScalarGridSpec(
                num_scalar_prefetch=0,
                grid=(n_pad // tn,),
                in_specs=[
                    pl.BlockSpec((tn, E), lambda i: (i, 0)),
                    pl.BlockSpec((E, G), lambda i: (0, 0)),
                    pl.BlockSpec((1, G), lambda i: (0, 0)),
                ],
                out_specs=pl.BlockSpec((tn, G), lambda i: (i, 0)),
            ),
            **common,
        )(x, wih_t, bih)

    return gi[:N] if n_pad != N else gi


# ----------------------------------------------------------------------------
# Kernel 2: GRU recurrence.  Input gates gi are precomputed; per timestep only
# gh = h @ W_hh^T is evaluated.  CHUNK_T timesteps per grid step, hidden state
# resident in VMEM as the output accumulator.  PyTorch gate order (r, z, n):
#   r = sigmoid(gi_r + gh_r);  z = sigmoid(gi_z + gh_z)
#   n = tanh(gi_n + r * gh_n); h' = (1 - z) * n + z * h
# Sequences are frozen once t >= length (packed-padded-sequence semantics, h0 = 0).
# ----------------------------------------------------------------------------
def _gru_kernel(maxlen_ref, gi_ref, whh_ref, bhh_ref, len_ref, h_ref):
    c = pl.program_id(0)
    T = gi_ref.shape[1]
    H = h_ref.shape[-1]

    @pl.when(c == 0)
    def _init():
        h_ref[...] = jnp.zeros_like(h_ref)

    # Skip chunks that are entirely past every sequence's length (scalar-prefetched).
    @pl.when(c * T < maxlen_ref[0])
    def _body():
        lens = len_ref[...]                      # (B, 1) int32
        whh = whh_ref[...]                       # (H, 3H) bf16
        bhh = bhh_ref[...]                       # (1, 3H) f32
        h = h_ref[...]                           # (B, H)  f32 carried state
        # statically unrolled inner loop over the T timesteps of this chunk
        for j in range(T):
            t = c * T + j
            gi = gi_ref[:, j, :]                 # (B, 3H) precomputed input gates
            gh = jnp.dot(h.astype(jnp.bfloat16), whh,
                         preferred_element_type=jnp.float32) + bhh
            r = jax.nn.sigmoid(gi[:, 0:H] + gh[:, 0:H])
            z = jax.nn.sigmoid(gi[:, H:2 * H] + gh[:, H:2 * H])
            n = jnp.tanh(gi[:, 2 * H:] + r * gh[:, 2 * H:])
            h_new = (1.0 - z) * n + z * h
            h = jnp.where(t < lens, h_new, h)    # freeze finished sequences
        h_ref[...] = h


def gru_last_hidden(gi, w_hh, b_hh, lengths, chunk_t=8):
    """gi: [B, S, 3H] f32, w_hh: [3H, H], b_hh: [3H], lengths: [B] -> h_last [B, H]."""
    B, S, G = gi.shape
    H = G // 3
    assert chunk_t % 8 == 0
    s_pad = _round_up(S, chunk_t)
    if s_pad != S:
        gi = jnp.pad(gi, ((0, 0), (0, s_pad - S), (0, 0)))

    whh_t = jnp.transpose(w_hh).astype(jnp.bfloat16)     # [H, 3H]
    bhh = b_hh.reshape(1, G).astype(jnp.float32)
    lens2d = lengths.reshape(B, 1).astype(jnp.int32)
    maxlen = jnp.max(lens2d).reshape(1).astype(jnp.int32)

    return pl.pallas_call(
        _gru_kernel,
        out_shape=jax.ShapeDtypeStruct((B, H), jnp.float32),
        grid_spec=pltpu.PrefetchScalarGridSpec(
            num_scalar_prefetch=1,                        # maxlen -> SMEM
            grid=(s_pad // chunk_t,),
            in_specs=[
                # batch-major gi; the index_map picks the time chunk (no host transpose)
                pl.BlockSpec((B, chunk_t, G), lambda c, ml: (0, c, 0)),
                pl.BlockSpec((H, G), lambda c, ml: (0, 0)),   # W_hh^T (grid-invariant)
                pl.BlockSpec((1, G), lambda c, ml: (0, 0)),   # b_hh   (grid-invariant)
                pl.BlockSpec((B, 1), lambda c, ml: (0, 0)),   # per-sequence lengths
            ],
            out_specs=pl.BlockSpec((B, H), lambda c, ml: (0, 0)),  # resident h accumulator
        ),
        compiler_params=pltpu.CompilerParams(
            dimension_semantics=("arbitrary",),            # sequential recurrence
            vmem_limit_bytes=32 * 1024 * 1024,
        ),
    )(maxlen, gi, whh_t, bhh, lens2d)


# ----------------------------------------------------------------------------
# Encoder forward (glue in plain JAX, hot paths in the Pallas kernels above)
# ----------------------------------------------------------------------------
def encoder_forward(inputs, params, inputs_lengths=None, *, tile_n=256, chunk_t=8):
    emb = params["embedding"]                               # [V, E]
    # get_sequences_lengths: count of non-padding (id != 0) tokens per sequence
    if inputs_lengths is None:
        inputs_lengths = jnp.sum((inputs != 0).astype(jnp.int32), axis=1)

    x = emb[inputs]                                         # [B, S, E] gather (XLA glue)
    # dropout: eval-mode identity

    B, S, E = x.shape
    H = params["w_hh"].shape[1]
    wih_t = jnp.transpose(params["w_ih"]).astype(jnp.bfloat16)   # [E, 3H]
    bih = params["b_ih"].reshape(1, 3 * H).astype(jnp.float32)

    # fused projection + input->hidden gate precompute over all B*S rows
    gi = precompute_input_gates(
        x.reshape(B * S, E), wih_t, bih,
        proj_w=params.get("proj_w"), proj_b=params.get("proj_b"),
        tile_n=tile_n)
    gi = gi.reshape(B, S, 3 * H)                            # stays batch-major

    h = gru_last_hidden(gi, params["w_hh"], params["w_hh"].dtype.type and params["b_hh"],
                        inputs_lengths, chunk_t=chunk_t) if False else \
        gru_last_hidden(gi, params["w_hh"], params["b_hh"], inputs_lengths, chunk_t=chunk_t)
    # nn.GRU final hidden is [nb_layers, B, H]; nb_layers = 1
    return h.reshape(1, B, H)


# ----------------------------------------------------------------------------
# Deterministic parameter init + example run
# ----------------------------------------------------------------------------
def init_params(key, vocab, emb_dim, hidden, embedding_projection=True):
    ks = jax.random.split(key, 7)
    scale = 0.1
    p = {
        "embedding": scale * jax.random.normal(ks[0], (vocab, emb_dim), jnp.float32),
        "w_ih":      scale * jax.random.normal(ks[3], (3 * hidden, emb_dim), jnp.float32),
        "w_hh":      scale * jax.random.normal(ks[4], (3 * hidden, hidden), jnp.float32),
        "b_ih":      scale * jax.random.normal(ks[5], (3 * hidden,), jnp.float32),
        "b_hh":      scale * jax.random.normal(ks[6], (3 * hidden,), jnp.float32),
    }
    if embedding_projection:
        p["proj_w"] = scale * jax.random.normal(ks[1], (emb_dim, emb_dim), jnp.float32)
        p["proj_b"] = scale * jax.random.normal(ks[2], (emb_dim,), jnp.float32)
    return p


if __name__ == "__main__":
    B, S, V, E, H = 2, 8, 16, 32, 32
    key = jax.random.PRNGKey(0)
    k_tok, k_par = jax.random.split(key)

    # token ids in [1, V); pad (id 0) the tail of the second sequence
    ids = jax.random.randint(k_tok, (B, S), 1, V, dtype=jnp.int32)
    pad_mask = jnp.array([[1] * S, [1] * 5 + [0] * 3], dtype=jnp.int32)  # lengths = [8, 5]
    inputs = ids * pad_mask

    # path 1: embedding_projection=True (Linear + ELU before the GRU)
    params = init_params(k_par, V, E, H, embedding_projection=True)
    hidden = encoder_forward(inputs, params)            # inputs_lengths=None -> computed
    hidden = jax.block_until_ready(hidden)
    assert hidden.shape == (1, B, H)
    assert bool(jnp.all(jnp.isfinite(hidden)))

    # path 2: embedding_projection=False (module default)
    params_np = init_params(k_par, V, E, H, embedding_projection=False)
    hidden2 = encoder_forward(inputs, params_np)
    hidden2 = jax.block_until_ready(hidden2)
    assert hidden2.shape == (1, B, H)
    assert bool(jnp.all(jnp.isfinite(hidden2)))

    print("KERNEL_OK")
</pallas_src>

<mosaic_0001>
module attributes {stable_mosaic.version = 11 : i64} {
  func.func @_proj_elu_gi_kernel(%arg0: i32, %arg1: memref<16x32xf32, #tpu.memory_space<vmem>>, %arg2: memref<32x32xbf16, #tpu.memory_space<vmem>>, %arg3: memref<1x32xf32, #tpu.memory_space<vmem>>, %arg4: memref<32x96xbf16, #tpu.memory_space<vmem>>, %arg5: memref<1x96xf32, #tpu.memory_space<vmem>>, %arg6: memref<16x96xf32, #tpu.memory_space<vmem>>) attributes {dimension_semantics = [#tpu.dimension_semantics<parallel>], iteration_bounds = array<i64: 1>, scalar_prefetch = 0 : i64, scratch_operands = 0 : i64, tpu.core_type = #tpu.core_type<tc>, window_params = [{transform_indices = @transform_0, window_bounds = array<i64: 16, 32>}, {pipeline_mode = #tpu.pipeline_mode<synchronous>, transform_indices = @transform_1, window_bounds = array<i64: 32, 32>}, {pipeline_mode = #tpu.pipeline_mode<synchronous>, transform_indices = @transform_2, window_bounds = array<i64: 1, 32>}, {pipeline_mode = #tpu.pipeline_mode<synchronous>, transform_indices = @transform_3, window_bounds = array<i64: 32, 96>}, {pipeline_mode = #tpu.pipeline_mode<synchronous>, transform_indices = @transform_4, window_bounds = array<i64: 1, 96>}, {transform_indices = @transform_5, window_bounds = array<i64: 16, 96>}]} {
    %c0 = arith.constant 0 : index
    %c0_0 = arith.constant 0 : index
    %0 = vector.load %arg1[%c0, %c0_0] : memref<16x32xf32, #tpu.memory_space<vmem>>, vector<16x32xf32>
    %1 = arith.truncf %0 : vector<16x32xf32> to vector<16x32xbf16>
    %c0_1 = arith.constant 0 : index
    %c0_2 = arith.constant 0 : index
    %2 = vector.load %arg2[%c0_1, %c0_2] : memref<32x32xbf16, #tpu.memory_space<vmem>>, vector<32x32xbf16>
    %cst = arith.constant dense<0.000000e+00> : vector<16x32xf32>
    %3 = tpu.matmul %1, %2, %cst {dimension_numbers = #tpu.dot_dimension_numbers<[1], [0], [0], [1], [0, 0, 1, 1], [], []>} : vector<16x32xbf16>, vector<32x32xbf16>, vector<16x32xf32> -> vector<16x32xf32>
    %c0_3 = arith.constant 0 : index
    %c0_4 = arith.constant 0 : index
    %4 = vector.load %arg3[%c0_3, %c0_4] : memref<1x32xf32, #tpu.memory_space<vmem>>, vector<1x32xf32>
    %5 = vector.broadcast %4 : vector<1x32xf32> to vector<16x32xf32>
    %6 = arith.addf %3, %5 : vector<16x32xf32>
    %cst_5 = arith.constant 0.000000e+00 : f32
    %7 = vector.broadcast %cst_5 : f32 to vector<16x32xf32>
    %8 = arith.cmpf ogt, %6, %7 : vector<16x32xf32>
    %9 = math.exp %6 : vector<16x32xf32>
    %cst_6 = arith.constant 1.000000e+00 : f32
    %10 = vector.broadcast %cst_6 : f32 to vector<16x32xf32>
    %11 = arith.subf %9, %10 : vector<16x32xf32>
    %12 = arith.select %8, %6, %11 : vector<16x32xi1>, vector<16x32xf32>
    %13 = arith.truncf %12 : vector<16x32xf32> to vector<16x32xbf16>
    %c0_7 = arith.constant 0 : index
    %c0_8 = arith.constant 0 : index
    %14 = vector.load %arg4[%c0_7, %c0_8] : memref<32x96xbf16, #tpu.memory_space<vmem>>, vector<32x96xbf16>
    %cst_9 = arith.constant dense<0.000000e+00> : vector<16x96xf32>
    %15 = tpu.matmul %13, %14, %cst_9 {dimension_numbers = #tpu.dot_dimension_numbers<[1], [0], [0], [1], [0, 0, 1, 1], [], []>} : vector<16x32xbf16>, vector<32x96xbf16>, vector<16x96xf32> -> vector<16x96xf32>
    %c0_10 = arith.constant 0 : index
    %c0_11 = arith.constant 0 : index
    %16 = vector.load %arg5[%c0_10, %c0_11] : memref<1x96xf32, #tpu.memory_space<vmem>>, vector<1x96xf32>
    %17 = vector.broadcast %16 : vector<1x96xf32> to vector<16x96xf32>
    %18 = arith.addf %15, %17 : vector<16x96xf32>
    %c0_12 = arith.constant 0 : index
    %c0_13 = arith.constant 0 : index
    %19 = vector.load %arg6[%c0_12, %c0_13] : memref<16x96xf32, #tpu.memory_space<vmem>>, vector<16x96xf32>
    tpu.vector_store %arg6[%c0_12, %c0_13], %18 {strides = array<i32>} : memref<16x96xf32, #tpu.memory_space<vmem>>, vector<16x96xf32>,
    return
  }
  func.func @transform_0(%arg0: i32) -> (i32, i32) {
    %c0_i32 = arith.constant 0 : i32
    %c0_i32_0 = arith.constant 0 : i32
    return %arg0, %c0_i32 : i32, i32
  }
  func.func @transform_1(%arg0: i32) -> (i32, i32) {
    %c0_i32 = arith.constant 0 : i32
    %c0_i32_0 = arith.constant 0 : i32
    %c0_i32_1 = arith.constant 0 : i32
    return %c0_i32, %c0_i32_0 : i32, i32
  }
  func.func @transform_2(%arg0: i32) -> (i32, i32) {
    %c0_i32 = arith.constant 0 : i32
    %c0_i32_0 = arith.constant 0 : i32
    %c0_i32_1 = arith.constant 0 : i32
    return %c0_i32, %c0_i32_0 : i32, i32
  }
  func.func @transform_3(%arg0: i32) -> (i32, i32) {
    %c0_i32 = arith.constant 0 : i32
    %c0_i32_0 = arith.constant 0 : i32
    %c0_i32_1 = arith.constant 0 : i32
    return %c0_i32, %c0_i32_0 : i32, i32
  }
  func.func @transform_4(%arg0: i32) -> (i32, i32) {
    %c0_i32 = arith.constant 0 : i32
    %c0_i32_0 = arith.constant 0 : i32
    %c0_i32_1 = arith.constant 0 : i32
    return %c0_i32, %c0_i32_0 : i32, i32
  }
  func.func @transform_5(%arg0: i32) -> (i32, i32) {
    %c0_i32 = arith.constant 0 : i32
    %c0_i32_0 = arith.constant 0 : i32
    return %arg0, %c0_i32 : i32, i32
  }
}

</mosaic_0001>

<llo_original>
// kernel: tpu_custom_call.1
$region0: #{tpu_custom_call.1}
  #allocation0 [shape = 'u32[]', space=smem, size = 0x4, offset = 0x4, fixed_abs, tag = 'smem constant byte address 0x4 - core index']
  #allocation1 [shape = 'u32[72,128]{1,0:T(1,128)}', space=vmem, size = 0x9000, scoped, tag = 'internal scratch']
  %s0 = inlined_call_operand.hbm [shape: f32[16,32], index: 0, kind: input, shape index: {}]
  %s1 = inlined_call_operand.hbm [shape: bf16[32,32], index: 1, kind: input, shape index: {}]
  %s2 = inlined_call_operand.vmem [shape: f32[1,32], index: 2, kind: input, shape index: {}]
  %s3 = inlined_call_operand.hbm [shape: bf16[32,96], index: 3, kind: input, shape index: {}]
  %s4 = inlined_call_operand.vmem [shape: f32[1,96], index: 4, kind: input, shape index: {}]
  %s5 = inlined_call_operand.hbm [shape: f32[16,96], index: 5, kind: output, shape index: {}]
  %s6 = sld [smem:[#allocation0]]
  $region42: #{tpu_custom_call.1} parent=0
    _
  %s8 = ssub.s32 1, %s6
  %s9 = scalar_select 0, %s8, %s6
  $region1: #{tpu_custom_call.1} parent=0
    #allocation2 [shape = 'u8[8192]{0}', space=vmem, size = 0x2000, scoped, tag = 'input window, operand 0, single buffered']
    #allocation3 [shape = 's32[1]{0}', space=sflag, size = 0x4, scoped, tag = 'scoped memory for tpu_custom_call.1']
    #allocation4 [shape = 's32[1]{0}', space=sflag, size = 0x4, scoped, tag = 'scoped memory for tpu_custom_call.1']
    #allocation5 [shape = 'u8[8192]{0}', space=vmem, size = 0x2000, scoped, tag = 'input window, operand 1, single buffered']
    #allocation6 [shape = 's32[1]{0}', space=sflag, size = 0x4, scoped, tag = 'scoped memory for tpu_custom_call.1']
    #allocation7 [shape = 'u8[8192]{0}', space=vmem, size = 0x2000, scoped, tag = 'input window, operand 3, single buffered']
    #allocation8 [shape = 'u8[8192]{0}', space=vmem, size = 0x2000, scoped, tag = 'output window, operand 0, single buffered']
    %10 = vsyncpa [#allocation3], 0
    %11 = vsyncpa [#allocation6], 0
    %12 = vsyncpa [#allocation4], 0
    // Predicated region
    $region2: #{tpu_custom_call.1} parent=1 // pred_check
      _
    $region3: #{tpu_custom_call.1} parent=1 // pred_check_branch
      %14 = sbr.rel (0) target = $region5
    $region4: #{tpu_custom_call.1} parent=1 // pred_region
      %16 = vsyncadd [#allocation3], 0
      %s17 = sshll.u32 %s0, 4
      %s18 = int_to_ptr.hbm [resolvable:$true] %s17
      %s19 = sshll.u32 [#allocation2], 4
      %s20 = int_to_ptr.vmem [resolvable:$true] %s19
      %25 = dma.hbm_to_vmem [thread:$0]  %s18, 256, %s20, [#allocation3], 128, 128, 8
    $region5: #{tpu_custom_call.1} parent=1 // pred_fallthru
      _
    // Predicated region
    $region6: #{tpu_custom_call.1} parent=1 // pred_check
      _
    $region7: #{tpu_custom_call.1} parent=1 // pred_check_branch
      %27 = sbr.rel (0) target = $region9
    $region8: #{tpu_custom_call.1} parent=1 // pred_region
      %29 = vsyncadd [#allocation6], 0
      %s30 = sshll.u32 %s1, 4
      %s31 = int_to_ptr.hbm [resolvable:$true] %s30
      %s32 = sshll.u32 [#allocation5], 4
      %s33 = int_to_ptr.vmem [resolvable:$true] %s32
      %38 = dma.hbm_to_vmem [thread:$0]  %s31, 256, %s33, [#allocation6], 64, 64, 4
    $region9: #{tpu_custom_call.1} parent=1 // pred_fallthru
      _
    // Predicated region
    $region10: #{tpu_custom_call.1} parent=1 // pred_check
      _
    $region11: #{tpu_custom_call.1} parent=1 // pred_check_branch
      %40 = sbr.rel (0) target = $region13
    $region12: #{tpu_custom_call.1} parent=1 // pred_region
      _
    $region13: #{tpu_custom_call.1} parent=1 // pred_fallthru
      _
    // Predicated region
    $region14: #{tpu_custom_call.1} parent=1 // pred_check
      _
    $region15: #{tpu_custom_call.1} parent=1 // pred_check_branch
      %42 = sbr.rel (0) target = $region17
    $region16: #{tpu_custom_call.1} parent=1 // pred_region
      %44 = vsyncadd [#allocation6], 0
      %s45 = sshll.u32 %s3, 4
      %s46 = int_to_ptr.hbm [resolvable:$true] %s45
      %s47 = sshll.u32 [#allocation7], 4
      %s48 = int_to_ptr.vmem [resolvable:$true] %s47
      %53 = dma.hbm_to_vmem [thread:$0]  %s46, 256, %s48, [#allocation6], 64, 64, 4
    $region17: #{tpu_custom_call.1} parent=1 // pred_fallthru
      _
    // Predicated region
    $region18: #{tpu_custom_call.1} parent=1 // pred_check
      _
    $region19: #{tpu_custom_call.1} parent=1 // pred_check_branch
      %55 = sbr.rel (0) target = $region21
    $region20: #{tpu_custom_call.1} parent=1 // pred_region
      _
    $region21: #{tpu_custom_call.1} parent=1 // pred_fallthru
      _
    // Predicated region
    $region22: #{tpu_custom_call.1} parent=1 // pred_check
      _
    $region23: #{tpu_custom_call.1} parent=1 // pred_check_branch
      %57 = sbr.rel (0) target = $region25
    $region24: #{tpu_custom_call.1} parent=1 // pred_region
      %59 = dma.done [#allocation3], 256
    $region25: #{tpu_custom_call.1} parent=1 // pred_fallthru
      _
    // Predicated region
    $region26: #{tpu_custom_call.1} parent=1 // pred_check
      _
    $region27: #{tpu_custom_call.1} parent=1 // pred_check_branch
      %61 = sbr.rel (0) target = $region29
    $region28: #{tpu_custom_call.1} parent=1 // pred_region
      %63 = dma.done [#allocation6], 256
    $region29: #{tpu_custom_call.1} parent=1 // pred_fallthru
      _
    // Predicated region
    $region30: #{tpu_custom_call.1} parent=1 // pred_check
      _
    $region31: #{tpu_custom_call.1} parent=1 // pred_check_branch
      %65 = sbr.rel (0) target = $region33
    $region32: #{tpu_custom_call.1} parent=1 // pred_region
      %67 = dma.done [#allocation6], 256
    $region33: #{tpu_custom_call.1} parent=1 // pred_fallthru
      _
    %v69 = vld [vmem:[#allocation2] sm:$0xff]
    %v70 = vld [vmem:[#allocation2 + $0x8] sm:$0xff]
    %v71 = vpack.c.bf16 %v70, %v69
    %v72 = vld [vmem:[#allocation5] sm:$0xf]
    %v73 = vld [vmem:[#allocation5 + $0x4] sm:$0xf]
    %v74 = vld [vmem:[#allocation5 + $0x8] sm:$0xf]
    %v75 = vld [vmem:[#allocation5 + $0xc] sm:$0xf]
    %v76 = vld [vmem:[%s2] sm:$0x1]
    %v78 = vperm.slane %v76, 0
    %v84 = vunpack.c.l.b16 %v72
    %v85 = vunpack.c.l.b16 %v73
    %v86 = vunpack.c.l.b16 %v74
    %v87 = vunpack.c.l.b16 %v75
    %v88 = vpack.c.b16 %v85, %v84
    %v89 = vpack.c.b16 %v87, %v86
    %vm92 = vcmask 261120
    %v94 = vsel %vm92, %v71, 0
    %96 = vmatpush.bf16.msra.mxu0 0
    %97 = vmatpush.bf16.msra.mxu0 0
    %98 = vmatpush.bf16.msra.mxu0 0
    %99 = vmatpush.bf16.msra.mxu0 0
    %100 = vmatpush.bf16.msra.mxu0 0
    %101 = vmatpush.bf16.msra.mxu0 0
    %102 = vmatpush.bf16.msra.mxu0 %v89
    %103 = vmatpush.bf16.msra.mxu0 %v88
    %104 = vmatmul.bf16.gmra.mxu0 %v94
    %v105 = vpop.f32.mrf.mxu0
    %v106 = vadd.f32 %v78, %v105
    %v107 = vpop.f32.mrf.mxu0
    %v108 = vadd.f32 %v78, %v107
    %109 = vdwg.mxu0
    %vm110 = vcmp.gt.f32.partialorder %v106, 0.0
    %vm111 = vcmp.gt.f32.partialorder %v108, 0.0
    %v112 = vmul.f32 %v106, 1.442695
    %v113 = vpow.pop %v112
    %v114 = vmul.f32 %v108, 1.442695
    %v115 = vpow.pop %v114
    %v116 = vsub.f32 %v113, 1.0
    %v117 = vsub.f32 %v115, 1.0
    %v118 = vsel %vm110, %v106, %v116
    %v119 = vsel %vm111, %v108, %v117
    %v120 = vpack.c.bf16 %v119, %v118
    %v121 = vld [vmem:[#allocation7] sm:$0xf]
    %v122 = vld [vmem:[#allocation7 + $0x4] sm:$0xf]
    %v123 = vld [vmem:[#allocation7 + $0x8] sm:$0xf]
    %v124 = vld [vmem:[#allocation7 + $0xc] sm:$0xf]
    %v125 = vld [vmem:[%s4] sm:$0x1]
    %v127 = vperm.slane %v125, 0
    %v133 = vunpack.c.l.b16 %v121
    %v134 = vunpack.c.l.b16 %v122
    %v135 = vunpack.c.l.b16 %v123
    %v136 = vunpack.c.l.b16 %v124
    %v137 = vpack.c.b16 %v134, %v133
    %v138 = vpack.c.b16 %v136, %v135
    %v142 = vsel %vm92, %v120, 0
    %144 = vmatpush.bf16.msra.mxu0 0
    %145 = vmatpush.bf16.msra.mxu0 0
    %146 = vmatpush.bf16.msra.mxu0 0
    %147 = vmatpush.bf16.msra.mxu0 0
    %148 = vmatpush.bf16.msra.mxu0 0
    %149 = vmatpush.bf16.msra.mxu0 0
    %150 = vmatpush.bf16.msra.mxu0 %v138
    %151 = vmatpush.bf16.msra.mxu0 %v137
    %152 = vmatmul.bf16.gmra.mxu0 %v142
    %v153 = vpop.f32.mrf.mxu0
    %v154 = vadd.f32 %v127, %v153
    %v155 = vpop.f32.mrf.mxu0
    %v156 = vadd.f32 %v127, %v155
    %157 = vdwg.mxu0
    %vm158 = vcmask 785408
    %159 = vst.msk [vmem:[#allocation8] sm:$0xff] %vm158, %v154
    %160 = vst.msk [vmem:[#allocation8 + $0x8] sm:$0xff] %vm158, %v156
    // Predicated region
    $region34: #{tpu_custom_call.1} parent=1 // pred_check
      _
    $region35: #{tpu_custom_call.1} parent=1 // pred_check_branch
      %162 = sbr.rel (0) target = $region37
    $region36: #{tpu_custom_call.1} parent=1 // pred_region
      %164 = vsyncadd [#allocation4], 0
      %s165 = sshll.u32 [#allocation8], 4
      %s166 = int_to_ptr.vmem [resolvable:$true] %s165
      %s167 = sshll.u32 %s5, 4
      %s168 = int_to_ptr.hbm [resolvable:$true] %s167
      %173 = dma.vmem_to_hbm [thread:$0]  %s166, 256, %s168, [#allocation4], 128, 128, 8
    $region37: #{tpu_custom_call.1} parent=1 // pred_fallthru
      _
    // Predicated region
    $region38: #{tpu_custom_call.1} parent=1 // pred_check
      _
    $region39: #{tpu_custom_call.1} parent=1 // pred_check_branch
      %175 = sbr.rel (0) target = $region41
    $region40: #{tpu_custom_call.1} parent=1 // pred_region
      %177 = dma.done [#allocation4], 256
    $region41: #{tpu_custom_call.1} parent=1 // pred_fallthru
      _
    %178 = vsyncpa [#allocation3], 1
    %179 = vsyncpa [#allocation6], 1
    %180 = vsyncpa [#allocation4], 1

</llo_original>
